<compile_context>
chip_gen: v6e
topology: v6e:2x2x1
jax: 0.10.0
libtpu: 0.0.40
codegen_flags: <defaults>
</compile_context>

<pallas_src>
import jax
import jax.numpy as jnp
from jax.experimental import pallas as pl
from jax.experimental.pallas import tpu as pltpu


def _channel_attention_kernel(x_ref, w1_ref, b1_ref, w2_ref, b2_ref, o_ref):
    # x_ref block: (TB, C, HW)
    # w1_ref: (1, C, hidden)  b1_ref: (1, 1, hidden)
    # w2_ref: (1, C, hidden)  b2_ref: (1, C, 1)
    x = x_ref[...]                                          # (TB, C, HW) f32
    tb = x.shape[0]
    inv_hw = 1.0 / x.shape[-1]

    # Global average / max pooling over the spatial (lane) axis.
    avg = jnp.sum(x, axis=-1, keepdims=True) * inv_hw       # (TB, C, 1)
    mx = jnp.max(x, axis=-1, keepdims=True)                 # (TB, C, 1)

    # Stack avg/max along the leading axis so the FC chain runs once.
    pooled = jnp.concatenate([avg, mx], axis=0)             # (2*TB, C, 1)

    # fc1: contract over C (sublane axis) via broadcast-mul + sum (VPU/XLU).
    h = jnp.sum(pooled * w1_ref[...], axis=1, keepdims=True) + b1_ref[...]
    h = jnp.maximum(h, 0.0)                                 # (2*TB, 1, hidden)

    # fc2: contract over hidden (lane axis); result already (2*TB, C, 1).
    logits = jnp.sum(h * w2_ref[...], axis=-1, keepdims=True) + b2_ref[...]

    # avg-branch + max-branch, sigmoid, scale x once.
    cw = jax.nn.sigmoid(logits[:tb] + logits[tb:])          # (TB, C, 1)
    o_ref[...] = x * cw                                     # lane-broadcast


def _pick_batch_tile(B, C, HW, itemsize, target_bytes=1 << 20):
    """~target-sized x blocks, but keep >= 2 grid steps so both v7x TCs work."""
    per_image = max(C * HW * itemsize, 1)
    tb = max(1, min(B, target_bytes // per_image))
    if B >= 2 and -(-B // tb) < 2:            # cdiv(B, tb) must be >= 2
        tb = -(-B // 2)
    return tb


@jax.jit
def channel_attention(x, w1, b1, w2, b2):
    """x: (B, C, H, W) f32; w1: (C, hidden); b1: (hidden,); w2: (hidden, C); b2: (C,)."""
    B, C, H, W = x.shape
    HW = H * W
    hidden = w1.shape[1]

    x_flat = x.reshape(B, C, HW)
    # Host-side (trace-time) re-shaping of parameters into broadcast layouts.
    w1_b = w1.reshape(1, C, hidden)
    b1_b = b1.reshape(1, 1, hidden)
    w2_b = jnp.transpose(w2).reshape(1, C, hidden)
    b2_b = b2.reshape(1, C, 1)

    tb = _pick_batch_tile(B, C, HW, x.dtype.itemsize)
    num_blocks = pl.cdiv(B, tb)

    param_bytes = (w1.size + b1.size + w2.size + b2.size) * x.dtype.itemsize
    cost = pl.CostEstimate(
        flops=3 * B * C * HW + 8 * B * C * hidden,
        transcendentals=B * C,
        bytes_accessed=2 * B * C * HW * x.dtype.itemsize + param_bytes,
    )

    out_flat = pl.pallas_call(
        _channel_attention_kernel,
        out_shape=jax.ShapeDtypeStruct((B, C, HW), x.dtype),
        grid_spec=pltpu.PrefetchScalarGridSpec(
            num_scalar_prefetch=0,
            grid=(num_blocks,),
            in_specs=[
                pl.BlockSpec((tb, C, HW), lambda b: (b, 0, 0)),
                pl.BlockSpec((1, C, hidden), lambda b: (0, 0, 0)),
                pl.BlockSpec((1, 1, hidden), lambda b: (0, 0, 0)),
                pl.BlockSpec((1, C, hidden), lambda b: (0, 0, 0)),
                pl.BlockSpec((1, C, 1), lambda b: (0, 0, 0)),
            ],
            out_specs=pl.BlockSpec((tb, C, HW), lambda b: (b, 0, 0)),
        ),
        compiler_params=pltpu.CompilerParams(
            dimension_semantics=("parallel",),
            vmem_limit_bytes=32 * 1024 * 1024,
        ),
        cost_estimate=cost,
    )(x_flat, w1_b, b1_b, w2_b, b2_b)

    return out_flat.reshape(B, C, H, W)


def _reference(x, w1, b1, w2, b2):
    # Pure-JAX reference mirroring the PyTorch forward.
    avg = jnp.mean(x, axis=(2, 3))                 # (B, C)
    mx = jnp.max(x, axis=(2, 3))                   # (B, C)

    def fc(v):
        h = jnp.maximum(v @ w1 + b1, 0.0)
        return h @ w2 + b2

    cw = jax.nn.sigmoid(fc(avg) + fc(mx))          # (B, C)
    return x * cw[:, :, None, None]


if __name__ == "__main__":
    # Module config: in_channels=32, reduction_ratio=16 -> hidden=2.
    B, C, H, W = 2, 32, 16, 16
    reduction_ratio = 16
    hidden = C // reduction_ratio

    key = jax.random.PRNGKey(0)
    kx, k1, k2, k3, k4 = jax.random.split(key, 5)

    x = jax.random.normal(kx, (B, C, H, W), dtype=jnp.float32)
    # Deterministic synthetic parameters (Linear(C, hidden), Linear(hidden, C)).
    w1 = jax.random.normal(k1, (C, hidden), dtype=jnp.float32) * 0.1
    b1 = jax.random.normal(k2, (hidden,), dtype=jnp.float32) * 0.1
    w2 = jax.random.normal(k3, (hidden, C), dtype=jnp.float32) * 0.1
    b2 = jax.random.normal(k4, (C,), dtype=jnp.float32) * 0.1

    out = channel_attention(x, w1, b1, w2, b2)
    out = jax.block_until_ready(out)

    ref = _reference(x, w1, b1, w2, b2)
    assert out.shape == (B, C, H, W)
    assert jnp.allclose(out, ref, atol=1e-5, rtol=1e-5), "mismatch vs reference"

    print("KERNEL_OK")
</pallas_src>

<mosaic_0001>
module attributes {stable_mosaic.version = 11 : i64} {
  func.func @_channel_attention_kernel(%arg0: i32, %arg1: memref<1x32x256xf32, #tpu.memory_space<vmem>>, %arg2: memref<1x32x2xf32, #tpu.memory_space<vmem>>, %arg3: memref<1x1x2xf32, #tpu.memory_space<vmem>>, %arg4: memref<1x32x2xf32, #tpu.memory_space<vmem>>, %arg5: memref<1x32x1xf32, #tpu.memory_space<vmem>>, %arg6: memref<1x32x256xf32, #tpu.memory_space<vmem>>) attributes {dimension_semantics = [#tpu.dimension_semantics<parallel>], iteration_bounds = array<i64: 2>, scalar_prefetch = 0 : i64, scratch_operands = 0 : i64, tpu.core_type = #tpu.core_type<tc>, window_params = [{transform_indices = @transform_0, window_bounds = array<i64: 1, 32, 256>}, {pipeline_mode = #tpu.pipeline_mode<synchronous>, transform_indices = @transform_1, window_bounds = array<i64: 1, 32, 2>}, {pipeline_mode = #tpu.pipeline_mode<synchronous>, transform_indices = @transform_2, window_bounds = array<i64: 1, 1, 2>}, {pipeline_mode = #tpu.pipeline_mode<synchronous>, transform_indices = @transform_3, window_bounds = array<i64: 1, 32, 2>}, {pipeline_mode = #tpu.pipeline_mode<synchronous>, transform_indices = @transform_4, window_bounds = array<i64: 1, 32, 1>}, {transform_indices = @transform_5, window_bounds = array<i64: 1, 32, 256>}]} {
    %c0 = arith.constant 0 : index
    %c0_0 = arith.constant 0 : index
    %c0_1 = arith.constant 0 : index
    %0 = vector.load %arg1[%c0, %c0_0, %c0_1] : memref<1x32x256xf32, #tpu.memory_space<vmem>>, vector<1x32x256xf32>
    %cst = arith.constant dense<0.000000e+00> : vector<1x32xf32>
    %1 = vector.multi_reduction <add>, %0, %cst [2] : vector<1x32x256xf32> to vector<1x32xf32>
    %2 = vector.shape_cast %1 : vector<1x32xf32> to vector<1x32x1xf32>
    %cst_2 = arith.constant 3.906250e-03 : f32
    %3 = vector.broadcast %cst_2 : f32 to vector<1x32x1xf32>
    %4 = arith.mulf %2, %3 : vector<1x32x1xf32>
    %cst_3 = arith.constant dense<0xFF800000> : vector<1x32xf32>
    %5 = vector.multi_reduction <maximumf>, %0, %cst_3 [2] : vector<1x32x256xf32> to vector<1x32xf32>
    %6 = vector.shape_cast %5 : vector<1x32xf32> to vector<1x32x1xf32>
    %7 = tpu.concatenate %4, %6 in 0 : vector<1x32x1xf32>, vector<1x32x1xf32> -> vector<2x32x1xf32>
    %c0_4 = arith.constant 0 : index
    %c0_5 = arith.constant 0 : index
    %c0_6 = arith.constant 0 : index
    %8 = vector.load %arg2[%c0_4, %c0_5, %c0_6] : memref<1x32x2xf32, #tpu.memory_space<vmem>>, vector<1x32x2xf32>
    %9 = vector.broadcast %7 : vector<2x32x1xf32> to vector<2x32x2xf32>
    %10 = vector.broadcast %8 : vector<1x32x2xf32> to vector<2x32x2xf32>
    %11 = arith.mulf %9, %10 : vector<2x32x2xf32>
    %cst_7 = arith.constant dense<0.000000e+00> : vector<2x2xf32>
    %12 = vector.multi_reduction <add>, %11, %cst_7 [1] : vector<2x32x2xf32> to vector<2x2xf32>
    %13 = vector.shape_cast %12 : vector<2x2xf32> to vector<2x1x2xf32>
    %c0_8 = arith.constant 0 : index
    %c0_9 = arith.constant 0 : index
    %c0_10 = arith.constant 0 : index
    %14 = vector.load %arg3[%c0_8, %c0_9, %c0_10] : memref<1x1x2xf32, #tpu.memory_space<vmem>>, vector<1x1x2xf32>
    %15 = vector.broadcast %14 : vector<1x1x2xf32> to vector<2x1x2xf32>
    %16 = arith.addf %13, %15 : vector<2x1x2xf32>
    %cst_11 = arith.constant 0.000000e+00 : f32
    %17 = vector.broadcast %cst_11 : f32 to vector<2x1x2xf32>
    %18 = arith.maximumf %16, %17 : vector<2x1x2xf32>
    %c0_12 = arith.constant 0 : index
    %c0_13 = arith.constant 0 : index
    %c0_14 = arith.constant 0 : index
    %19 = vector.load %arg4[%c0_12, %c0_13, %c0_14] : memref<1x32x2xf32, #tpu.memory_space<vmem>>, vector<1x32x2xf32>
    %20 = vector.broadcast %18 : vector<2x1x2xf32> to vector<2x32x2xf32>
    %21 = vector.broadcast %19 : vector<1x32x2xf32> to vector<2x32x2xf32>
    %22 = arith.mulf %20, %21 : vector<2x32x2xf32>
    %cst_15 = arith.constant dense<0.000000e+00> : vector<2x32xf32>
    %23 = vector.multi_reduction <add>, %22, %cst_15 [2] : vector<2x32x2xf32> to vector<2x32xf32>
    %24 = vector.shape_cast %23 : vector<2x32xf32> to vector<2x32x1xf32>
    %c0_16 = arith.constant 0 : index
    %c0_17 = arith.constant 0 : index
    %c0_18 = arith.constant 0 : index
    %25 = vector.load %arg5[%c0_16, %c0_17, %c0_18] : memref<1x32x1xf32, #tpu.memory_space<vmem>>, vector<1x32x1xf32>
    %26 = vector.broadcast %25 : vector<1x32x1xf32> to vector<2x32x1xf32>
    %27 = arith.addf %24, %26 : vector<2x32x1xf32>
    %28 = vector.extract_strided_slice %27 {offsets = [0, 0, 0], sizes = [1, 32, 1], strides = [1, 1, 1]} : vector<2x32x1xf32> to vector<1x32x1xf32>
    %29 = vector.extract_strided_slice %27 {offsets = [1, 0, 0], sizes = [1, 32, 1], strides = [1, 1, 1]} : vector<2x32x1xf32> to vector<1x32x1xf32>
    %30 = arith.addf %28, %29 : vector<1x32x1xf32>
    %31 = arith.negf %30 : vector<1x32x1xf32>
    %32 = math.exp %31 : vector<1x32x1xf32>
    %cst_19 = arith.constant 1.000000e+00 : f32
    %33 = vector.broadcast %cst_19 : f32 to vector<1x32x1xf32>
    %34 = arith.addf %33, %32 : vector<1x32x1xf32>
    %35 = arith.divf %33, %34 : vector<1x32x1xf32>
    %36 = vector.broadcast %35 : vector<1x32x1xf32> to vector<1x32x256xf32>
    %37 = arith.mulf %0, %36 : vector<1x32x256xf32>
    %c0_20 = arith.constant 0 : index
    %c0_21 = arith.constant 0 : index
    %c0_22 = arith.constant 0 : index
    %38 = vector.load %arg6[%c0_20, %c0_21, %c0_22] : memref<1x32x256xf32, #tpu.memory_space<vmem>>, vector<1x32x256xf32>
    tpu.vector_store %arg6[%c0_20, %c0_21, %c0_22], %37 {strides = array<i32>} : memref<1x32x256xf32, #tpu.memory_space<vmem>>, vector<1x32x256xf32>,
    return
  }
  func.func @transform_0(%arg0: i32) -> (i32, i32, i32) {
    %c0_i32 = arith.constant 0 : i32
    %c0_i32_0 = arith.constant 0 : i32
    %c0_i32_1 = arith.constant 0 : i32
    return %arg0, %c0_i32, %c0_i32_0 : i32, i32, i32
  }
  func.func @transform_1(%arg0: i32) -> (i32, i32, i32) {
    %c0_i32 = arith.constant 0 : i32
    %c0_i32_0 = arith.constant 0 : i32
    %c0_i32_1 = arith.constant 0 : i32
    %c0_i32_2 = arith.constant 0 : i32
    return %c0_i32, %c0_i32_0, %c0_i32_1 : i32, i32, i32
  }
  func.func @transform_2(%arg0: i32) -> (i32, i32, i32) {
    %c0_i32 = arith.constant 0 : i32
    %c0_i32_0 = arith.constant 0 : i32
    %c0_i32_1 = arith.constant 0 : i32
    %c0_i32_2 = arith.constant 0 : i32
    return %c0_i32, %c0_i32_0, %c0_i32_1 : i32, i32, i32
  }
  func.func @transform_3(%arg0: i32) -> (i32, i32, i32) {
    %c0_i32 = arith.constant 0 : i32
    %c0_i32_0 = arith.constant 0 : i32
    %c0_i32_1 = arith.constant 0 : i32
    %c0_i32_2 = arith.constant 0 : i32
    return %c0_i32, %c0_i32_0, %c0_i32_1 : i32, i32, i32
  }
  func.func @transform_4(%arg0: i32) -> (i32, i32, i32) {
    %c0_i32 = arith.constant 0 : i32
    %c0_i32_0 = arith.constant 0 : i32
    %c0_i32_1 = arith.constant 0 : i32
    %c0_i32_2 = arith.constant 0 : i32
    return %c0_i32, %c0_i32_0, %c0_i32_1 : i32, i32, i32
  }
  func.func @transform_5(%arg0: i32) -> (i32, i32, i32) {
    %c0_i32 = arith.constant 0 : i32
    %c0_i32_0 = arith.constant 0 : i32
    %c0_i32_1 = arith.constant 0 : i32
    return %arg0, %c0_i32, %c0_i32_0 : i32, i32, i32
  }
}

</mosaic_0001>

<llo_original>
// kernel: channel_attention.1
$region0: #{channel_attention.1}
  #allocation0 [shape = 'u32[]', space=smem, size = 0x4, offset = 0x4, fixed_abs, tag = 'smem constant byte address 0x4 - core index']
  #allocation1 [shape = 'u32[144,128]{1,0:T(1,128)}', space=vmem, size = 0x12000, scoped, tag = 'internal scratch']
  %s0 = inlined_call_operand.vmem [shape: f32[2,32,256], index: 0, kind: input, shape index: {}]
  %s1 = inlined_call_operand.vmem [shape: f32[1,32,2], index: 1, kind: input, shape index: {}]
  %s2 = inlined_call_operand.vmem [shape: f32[1,1,2], index: 2, kind: input, shape index: {}]
  %s3 = inlined_call_operand.vmem [shape: f32[1,32,2], index: 3, kind: input, shape index: {}]
  %s4 = inlined_call_operand.vmem [shape: f32[1,32,1], index: 4, kind: input, shape index: {}]
  %s5 = inlined_call_operand.vmem [shape: f32[2,32,256], index: 5, kind: output, shape index: {}]
  %s6 = sld [smem:[#allocation0]]
  $region53: #{channel_attention.1} parent=0
    _
  %s8 = ssub.s32 1, %s6
  %s9 = scalar_select 0, %s8, %s6
  loop: start=0, step=1, limit=4
  $region2: #{channel_attention.1} parent=0 // loop_pre_header
    _
  $region3: #{channel_attention.1} parent=0 // loop_header
    %s11 = sphi 0, %s15
    %p12 = scmp.ge.s32.totalorder %s11, 4
    %s21 = sphi 0, %s23
    %s24 = sphi 0, %s21
    %s25 = sphi 0, %s24
    %s41 = sphi 0, %s25
    %s45 = sphi 0, %s45
    %s47 = sphi 0, %s45
    %s48 = sphi 0, %s47
    %s62 = sphi 0, %s48
    %s66 = sphi 0, %s66
    %s68 = sphi 0, %s66
    %s69 = sphi 0, %s68
    %s83 = sphi 0, %s69
    %s87 = sphi 0, %s87
    %s89 = sphi 0, %s87
    %s90 = sphi 0, %s89
    %s104 = sphi 0, %s90
    %s108 = sphi 0, %s108
    %s110 = sphi 0, %s108
    %s111 = sphi 0, %s110
    %s125 = sphi 0, %s111
    %s131 = sphi 0, %s133
    %s134 = sphi 0, %s131
    %s135 = sphi 0, %s134
    %s151 = sphi 0, %s135
  $region4: #{channel_attention.1} parent=0 // loop_header_branch
    %14 = sbr.rel (%p12) target = $region8
  $region5: #{channel_attention.1} parent=0 // loop_body
    %s16 = ssub.s32 %s11, 1
    %s17 = ssub.s32 %s11, 2
    %s18 = sadd.s32 %s11, 1
    %s19 = ssub.s32 %s11, %s18
    %p20 = scmp.eq.s32.totalorder %s19, 0
    %s22 = sadd.s32 %s21, 1
    %s23 = scalar_select %p20, %s21, %s22
    %p26 = pneg %p20
    %p27 = scmp.eq.s32.totalorder %s11, 1
    %p28 = por %p26, %p27
    %p29 = scmp.ne.s32.totalorder %s21, %s24
    %p30 = scmp.eq.s32.totalorder %s11, 0
    %p31 = por %p29, %p30
    %p32 = scmp.ne.s32.totalorder %s21, %s24
    %p33 = scmp.eq.s32.totalorder %s16, 1
    %p34 = por %p32, %p33
    %p35 = scmp.ne.s32.totalorder %s24, %s25
    %p36 = scmp.eq.s32.totalorder %s16, 0
    %p37 = por %p35, %p36
    %p38 = scmp.ne.s32.totalorder %s24, %s25
    %p39 = scmp.eq.s32.totalorder %s17, 1
    %p40 = por %p38, %p39
    %p42 = scmp.ne.s32.totalorder %s25, %s41
    %p43 = scmp.eq.s32.totalorder %s17, 0
    %p44 = por %p42, %p43
    %s46 = sadd.s32 %s45, 1
    %p49 = scmp.eq.s32.totalorder %s11, 1
    %p50 = scmp.ne.s32.totalorder %s45, %s47
    %p51 = scmp.eq.s32.totalorder %s11, 0
    %p52 = por %p50, %p51
    %p53 = scmp.ne.s32.totalorder %s45, %s47
    %p54 = scmp.eq.s32.totalorder %s16, 1
    %p55 = por %p53, %p54
    %p56 = scmp.ne.s32.totalorder %s47, %s48
    %p57 = scmp.eq.s32.totalorder %s16, 0
    %p58 = por %p56, %p57
    %p59 = scmp.ne.s32.totalorder %s47, %s48
    %p60 = scmp.eq.s32.totalorder %s17, 1
    %p61 = por %p59, %p60
    %p63 = scmp.ne.s32.totalorder %s48, %s62
    %p64 = scmp.eq.s32.totalorder %s17, 0
    %p65 = por %p63, %p64
    %s67 = sadd.s32 %s66, 1
    %p70 = scmp.eq.s32.totalorder %s11, 1
    %p71 = scmp.ne.s32.totalorder %s66, %s68
    %p72 = scmp.eq.s32.totalorder %s11, 0
    %p73 = por %p71, %p72
    %p74 = scmp.ne.s32.totalorder %s66, %s68
    %p75 = scmp.eq.s32.totalorder %s16, 1
    %p76 = por %p74, %p75
    %p77 = scmp.ne.s32.totalorder %s68, %s69
    %p78 = scmp.eq.s32.totalorder %s16, 0
    %p79 = por %p77, %p78
    %p80 = scmp.ne.s32.totalorder %s68, %s69
    %p81 = scmp.eq.s32.totalorder %s17, 1
    %p82 = por %p80, %p81
    %p84 = scmp.ne.s32.totalorder %s69, %s83
    %p85 = scmp.eq.s32.totalorder %s17, 0
    %p86 = por %p84, %p85
    %s88 = sadd.s32 %s87, 1
    %p91 = scmp.eq.s32.totalorder %s11, 1
    %p92 = scmp.ne.s32.totalorder %s87, %s89
    %p93 = scmp.eq.s32.totalorder %s11, 0
    %p94 = por %p92, %p93
    %p95 = scmp.ne.s32.totalorder %s87, %s89
    %p96 = scmp.eq.s32.totalorder %s16, 1
    %p97 = por %p95, %p96
    %p98 = scmp.ne.s32.totalorder %s89, %s90
    %p99 = scmp.eq.s32.totalorder %s16, 0
    %p100 = por %p98, %p99
    %p101 = scmp.ne.s32.totalorder %s89, %s90
    %p102 = scmp.eq.s32.totalorder %s17, 1
    %p103 = por %p101, %p102
    %p105 = scmp.ne.s32.totalorder %s90, %s104
    %p106 = scmp.eq.s32.totalorder %s17, 0
    %p107 = por %p105, %p106
    %s109 = sadd.s32 %s108, 1
    %p112 = scmp.eq.s32.totalorder %s11, 1
    %p113 = scmp.ne.s32.totalorder %s108, %s110
    %p114 = scmp.eq.s32.totalorder %s11, 0
    %p115 = por %p113, %p114
    %p116 = scmp.ne.s32.totalorder %s108, %s110
    %p117 = scmp.eq.s32.totalorder %s16, 1
    %p118 = por %p116, %p117
    %p119 = scmp.ne.s32.totalorder %s110, %s111
    %p120 = scmp.eq.s32.totalorder %s16, 0
    %p121 = por %p119, %p120
    %p122 = scmp.ne.s32.totalorder %s110, %s111
    %p123 = scmp.eq.s32.totalorder %s17, 1
    %p124 = por %p122, %p123
    %p126 = scmp.ne.s32.totalorder %s111, %s125
    %p127 = scmp.eq.s32.totalorder %s17, 0
    %p128 = por %p126, %p127
    %s129 = ssub.s32 %s11, %s18
    %p130 = scmp.eq.s32.totalorder %s129, 0
    %s132 = sadd.s32 %s131, 1
    %s133 = scalar_select %p130, %s131, %s132
    %p136 = pneg %p130
    %p137 = scmp.eq.s32.totalorder %s11, 1
    %p138 = por %p136, %p137
    %p139 = scmp.ne.s32.totalorder %s131, %s134
    %p140 = scmp.eq.s32.totalorder %s11, 0
    %p141 = por %p139, %p140
    %p142 = scmp.ne.s32.totalorder %s131, %s134
    %p143 = scmp.eq.s32.totalorder %s16, 1
    %p144 = por %p142, %p143
    %p145 = scmp.ne.s32.totalorder %s134, %s135
    %p146 = scmp.eq.s32.totalorder %s16, 0
    %p147 = por %p145, %p146
    %p148 = scmp.ne.s32.totalorder %s134, %s135
    %p149 = scmp.eq.s32.totalorder %s17, 1
    %p150 = por %p148, %p149
    %p152 = scmp.ne.s32.totalorder %s135, %s151
    %p153 = scmp.eq.s32.totalorder %s17, 0
    %p154 = por %p152, %p153
    %p155 = scmp.le.s32.totalorder 1, %s11
    %p156 = scmp.lt.s32.totalorder %s11, 3
    %p157 = pnand %p155, %p156
    %p158 = pneg %p157
    // Predicated region
    $region9: #{channel_attention.1} parent=5 // pred_check
      _
    $region10: #{channel_attention.1} parent=5 // pred_check_branch
      %160 = sbr.rel (%p157) target = $region12
    $region11: #{channel_attention.1} parent=5 // pred_region
      %s161 = ssub.s32 %s11, 1
      // Predicated region
      $region13: #{channel_attention.1} parent=11 // pred_check
        %p162 = pneg %p58
      $region14: #{channel_attention.1} parent=11 // pred_check_branch
        %164 = sbr.rel (%p162) target = $region16
      $region15: #{channel_attention.1} parent=11 // pred_region
        _
      $region16: #{channel_attention.1} parent=11 // pred_fallthru
        _
      // Predicated region
      $region17: #{channel_attention.1} parent=11 // pred_check
        %p165 = pneg %p79
      $region18: #{channel_attention.1} parent=11 // pred_check_branch
        %167 = sbr.rel (%p165) target = $region20
      $region19: #{channel_attention.1} parent=11 // pred_region
        _
      $region20: #{channel_attention.1} parent=11 // pred_fallthru
        _
      // Predicated region
      $region21: #{channel_attention.1} parent=11 // pred_check
        %p168 = pneg %p100
      $region22: #{channel_attention.1} parent=11 // pred_check_branch
        %170 = sbr.rel (%p168) target = $region24
      $region23: #{channel_attention.1} parent=11 // pred_region
        _
      $region24: #{channel_attention.1} parent=11 // pred_fallthru
        _
      // Predicated region
      $region25: #{channel_attention.1} parent=11 // pred_check
        %p171 = pneg %p121
      $region26: #{channel_attention.1} parent=11 // pred_check_branch
        %173 = sbr.rel (%p171) target = $region28
      $region27: #{channel_attention.1} parent=11 // pred_region
        _
      $region28: #{channel_attention.1} parent=11 // pred_fallthru
        _
    $region12: #{channel_attention.1} parent=5 // pred_fallthru
      _
    %p174 = scmp.lt.s32.totalorder %s11, 2
    // Predicated region
    $region29: #{channel_attention.1} parent=5 // pred_check
      %p175 = pneg %p174
    $region30: #{channel_attention.1} parent=5 // pred_check_branch
      %177 = sbr.rel (%p175) target = $region32
    $region31: #{channel_attention.1} parent=5 // pred_region
      // Predicated region
      $region33: #{channel_attention.1} parent=31 // pred_check
        %p178 = pneg %p31
      $region34: #{channel_attention.1} parent=31 // pred_check_branch
        %180 = sbr.rel (%p178) target = $region36
      $region35: #{channel_attention.1} parent=31 // pred_region
        %p181 = scmp.lt.s32.totalorder %s11, 1
        %s182 = scalar_select %p181, %s11, 1
        %s183 = smul.addr %s182, 8
        %s184 = smul.addr %s183, 8
        %s185 = scalar_lea.vmem %s0, %s184
      $region36: #{channel_attention.1} parent=31 // pred_fallthru
        _
    $region32: #{channel_attention.1} parent=5 // pred_fallthru
      _
    %p186 = scmp.le.s32.totalorder 1, %s11
    %p187 = scmp.lt.s32.totalorder %s11, 3
    %p188 = pnand %p186, %p187
    %p189 = pneg %p188
    // Predicated region
    $region37: #{channel_attention.1} parent=5 // pred_check
      _
    $region38: #{channel_attention.1} parent=5 // pred_check_branch
      %191 = sbr.rel (%p188) target = $region40
    $region39: #{channel_attention.1} parent=5 // pred_region
      %s192 = ssub.s32 %s11, 1
      %p193 = scmp.lt.s32.totalorder %s16, 1
      %s194 = scalar_select %p193, %s16, 1
      %s195 = smul.addr %s194, 8
      %s196 = smul.addr %s195, 8
      %s197 = scalar_lea.vmem %s0, %s196
      %p198 = pneg %p37
      %p199 = pneg %p34
      %p200 = pneg %p58
      %p201 = pneg %p55
      %p202 = pneg %p79
      %p203 = pneg %p76
      %p204 = pneg %p100
      %p205 = pneg %p97
      %p206 = pneg %p121
      %p207 = pneg %p118
      %p208 = pneg %p147
      %p209 = pneg %p144
      %p210 = scmp.lt.s32.totalorder %s16, 1
      %s211 = scalar_select %p210, %s16, 1
      %s212 = smul.addr %s211, 8
      %s213 = smul.addr %s212, 8
      %s214 = scalar_lea.vmem %s5, %s213
      %p215 = scmp.lt.s32.totalorder %s16, 1
      %s216 = scalar_select %p215, %s16, 1
      %s217 = smul.addr %s216, 8
      %s218 = smul.addr %s217, 8
      %s219 = scalar_lea.vmem %s0, %s218
      %p220 = scmp.lt.s32.totalorder %s16, 1
      %s221 = scalar_select %p220, %s16, 1
      %s222 = smul.addr %s221, 8
      %s223 = smul.addr %s222, 8
      %s224 = scalar_lea.vmem %s5, %s223
      %v225 = vld [vmem:[%s219] sm:$0xff]
      %v226 = vld [vmem:[%s219 + $0x8] sm:$0xff]
      %v227 = vld [vmem:[%s219 + $0x10] sm:$0xff]
      %v228 = vld [vmem:[%s219 + $0x18] sm:$0xff]
      %v229 = vld [vmem:[%s219 + $0x20] sm:$0xff]
      %v230 = vld [vmem:[%s219 + $0x28] sm:$0xff]
      %v231 = vld [vmem:[%s219 + $0x30] sm:$0xff]
      %v232 = vld [vmem:[%s219 + $0x38] sm:$0xff]
      %v233 = vadd.f32 %v225, %v226
      %234 = vadd.xlane.f32.xlu0 %v233
      %v235 = vpop.xlane.xlu0 %234
      %v236 = vadd.f32 %v227, %v228
      %237 = vadd.xlane.f32.xlu0 %v236
      %v238 = vpop.xlane.xlu0 %237
      %v239 = vadd.f32 %v229, %v230
      %240 = vadd.xlane.f32.xlu0 %v239
      %v241 = vpop.xlane.xlu0 %240
      %v242 = vadd.f32 %v231, %v232
      %243 = vadd.xlane.f32.xlu0 %v242
      %v244 = vpop.xlane.xlu0 %243
      %v245 = vmul.f32 %v235, 0.00390625
      %v246 = vmul.f32 %v238, 0.00390625
      %v247 = vmul.f32 %v241, 0.00390625
      %v248 = vmul.f32 %v244, 0.00390625
      %v249 = vmax.f32 %v225, %v226
      %250 = vmax.xlane.f32.xlu0 %v249
      %v251 = vpop.xlane.xlu0 %250
      %v252 = vmax.f32 %v227, %v228
      %253 = vmax.xlane.f32.xlu0 %v252
      %v254 = vpop.xlane.xlu0 %253
      %v255 = vmax.f32 %v229, %v230
      %256 = vmax.xlane.f32.xlu0 %v255
      %v257 = vpop.xlane.xlu0 %256
      %v258 = vmax.f32 %v231, %v232
      %259 = vmax.xlane.f32.xlu0 %v258
      %v260 = vpop.xlane.xlu0 %259
      %v261 = vld [vmem:[%s1] sm:$0xff]
      %v262 = vld [vmem:[%s1 + $0x8] sm:$0xff]
      %v263 = vld [vmem:[%s1 + $0x10] sm:$0xff]
      %v264 = vld [vmem:[%s1 + $0x18] sm:$0xff]
      %266 = vset.pattern.permute.xlu0 0
      %267 = vperm.xlu0 %266, %v245
      %v268 = vpop.permute.xlu0 %267
      %271 = vset.pattern.permute.xlu0 0
      %272 = vperm.xlu0 %271, %v246
      %v273 = vpop.permute.xlu0 %272
      %276 = vset.pattern.permute.xlu0 0
      %277 = vperm.xlu0 %276, %v247
      %v278 = vpop.permute.xlu0 %277
      %281 = vset.pattern.permute.xlu0 0
      %282 = vperm.xlu0 %281, %v248
      %v283 = vpop.permute.xlu0 %282
      %286 = vset.pattern.permute.xlu0 0
      %287 = vperm.xlu0 %286, %v251
      %v288 = vpop.permute.xlu0 %287
      %291 = vset.pattern.permute.xlu0 0
      %292 = vperm.xlu0 %291, %v254
      %v293 = vpop.permute.xlu0 %292
      %296 = vset.pattern.permute.xlu0 0
      %297 = vperm.xlu0 %296, %v257
      %v298 = vpop.permute.xlu0 %297
      %301 = vset.pattern.permute.xlu0 0
      %302 = vperm.xlu0 %301, %v260
      %v303 = vpop.permute.xlu0 %302
      %v305 = vmul.f32 %v268, %v261
      %v306 = vmul.f32 %v273, %v262
      %v307 = vmul.f32 %v278, %v263
      %v308 = vmul.f32 %v283, %v264
      %v309 = vmul.f32 %v288, %v261
      %v310 = vmul.f32 %v293, %v262
      %v311 = vmul.f32 %v298, %v263
      %v312 = vmul.f32 %v303, %v264
      %vm313 = vcmask 15360
      %v314 = vsel %vm313, %v305, 0.0
      %v315 = vsel %vm313, %v306, 0.0
      %v316 = vadd.f32 %v314, %v315
      %v317 = vsel %vm313, %v307, 0.0
      %v318 = vadd.f32 %v316, %v317
      %v319 = vsel %vm313, %v308, 0.0
      %v320 = vadd.f32 %v318, %v319
      %v321 = vrot.slane %v320, 4
      %v322 = vadd.f32 %v320, %v321
      %v323 = vrot.slane %v322, 2
      %v324 = vadd.f32 %v322, %v323
      %v325 = vrot.slane %v324, 1
      %v326 = vadd.f32 %v324, %v325
      %v327 = vsel %vm313, %v309, 0.0
      %v328 = vsel %vm313, %v310, 0.0
      %v329 = vadd.f32 %v327, %v328
      %v330 = vsel %vm313, %v311, 0.0
      %v331 = vadd.f32 %v329, %v330
      %v332 = vsel %vm313, %v312, 0.0
      %v333 = vadd.f32 %v331, %v332
      %v334 = vrot.slane %v333, 4
      %v335 = vadd.f32 %v333, %v334
      %v336 = vrot.slane %v335, 2
      %v337 = vadd.f32 %v335, %v336
      %v338 = vrot.slane %v337, 1
      %v339 = vadd.f32 %v337, %v338
      %v340 = vld [vmem:[%s2] sm:$0x1]
      %v341 = vadd.f32 %v326, %v340
      %v342 = vadd.f32 %v339, %v340
      %v343 = vmax.f32 %v341, 0.0
      %v344 = vmax.f32 %v342, 0.0
      %v345 = vld [vmem:[%s3] sm:$0xff]
      %v346 = vld [vmem:[%s3 + $0x8] sm:$0xff]
      %v347 = vld [vmem:[%s3 + $0x10] sm:$0xff]
      %v348 = vld [vmem:[%s3 + $0x18] sm:$0xff]
      %v349 = vlaneseq
      %v350 = vshrl.u32 %v349, 7
      %v351 = vsub.s32 0, %v350
      %v352 = vrot.slane %v343, %v351
      %v353 = vlaneseq
      %v354 = vshrl.u32 %v353, 7
      %v355 = vsub.s32 0, %v354
      %v356 = vrot.slane %v344, %v355
      %v357 = vmul.f32 %v352, %v345
      %v358 = vmul.f32 %v352, %v346
      %v359 = vmul.f32 %v352, %v347
      %v360 = vmul.f32 %v352, %v348
      %v361 = vmul.f32 %v356, %v345
      %v362 = vmul.f32 %v356, %v346
      %v363 = vmul.f32 %v356, %v347
      %v364 = vmul.f32 %v356, %v348
      %v365 = vsel %vm313, %v357, 0.0
      %366 = vadd.xlane.f32.xlu0 %v365
      %v367 = vpop.xlane.xlu0 %366
      %v368 = vsel %vm313, %v358, 0.0
      %369 = vadd.xlane.f32.xlu0 %v368
      %v370 = vpop.xlane.xlu0 %369
      %v371 = vsel %vm313, %v359, 0.0
      %372 = vadd.xlane.f32.xlu0 %v371
      %v373 = vpop.xlane.xlu0 %372
      %v374 = vsel %vm313, %v360, 0.0
      %375 = vadd.xlane.f32.xlu0 %v374
      %v376 = vpop.xlane.xlu0 %375
      %v377 = vsel %vm313, %v361, 0.0
      %378 = vadd.xlane.f32.xlu0 %v377
      %v379 = vpop.xlane.xlu0 %378
      %v380 = vsel %vm313, %v362, 0.0
      %381 = vadd.xlane.f32.xlu0 %v380
      %v382 = vpop.xlane.xlu0 %381
      %v383 = vsel %vm313, %v363, 0.0
      %384 = vadd.xlane.f32.xlu0 %v383
      %v385 = vpop.xlane.xlu0 %384
      %v386 = vsel %vm313, %v364, 0.0
      %387 = vadd.xlane.f32.xlu0 %v386
      %v388 = vpop.xlane.xlu0 %387
      %v389 = vld [vmem:[%s4] sm:$0xff]
      %v390 = vld [vmem:[%s4 + $0x8] sm:$0xff]
      %v391 = vld [vmem:[%s4 + $0x10] sm:$0xff]
      %v392 = vld [vmem:[%s4 + $0x18] sm:$0xff]
      %v393 = vadd.f32 %v367, %v389
      %v394 = vadd.f32 %v370, %v390
      %v395 = vadd.f32 %v373, %v391
      %v396 = vadd.f32 %v376, %v392
      %v397 = vadd.f32 %v379, %v389
      %v398 = vadd.f32 %v382, %v390
      %v399 = vadd.f32 %v385, %v391
      %v400 = vadd.f32 %v388, %v392
      %v401 = vadd.f32 %v393, %v397
      %v402 = vadd.f32 %v394, %v398
      %v403 = vadd.f32 %v395, %v399
      %v404 = vadd.f32 %v396, %v400
      %v405 = vxor.u32 %v401, 2147483648
      %v406 = vxor.u32 %v402, 2147483648
      %v407 = vxor.u32 %v403, 2147483648
      %v408 = vxor.u32 %v404, 2147483648
      %v409 = vmul.f32 %v405, 1.442695
      %v410 = vpow.pop %v409
      %v411 = vmul.f32 %v406, 1.442695
      %v412 = vpow.pop %v411
      %v413 = vmul.f32 %v407, 1.442695
      %v414 = vpow.pop %v413
      %v415 = vmul.f32 %v408, 1.442695
      %v416 = vpow.pop %v415
      %v417 = vadd.f32 %v410, 1.0
      %v418 = vadd.f32 %v412, 1.0
      %v419 = vadd.f32 %v414, 1.0
      %v420 = vadd.f32 %v416, 1.0
      %v421 = vrcp.pop %v417
      %v422 = vmul.f32 1.0, %v421
      %v423 = vrcp.pop %v418
      %v424 = vmul.f32 1.0, %v423
      %v425 = vrcp.pop %v419
      %v426 = vmul.f32 1.0, %v425
      %v427 = vrcp.pop %v420
      %v428 = vmul.f32 1.0, %v427
      %430 = vset.pattern.permute.xlu0 0
      %431 = vperm.xlu0 %430, %v422
      %v432 = vpop.permute.xlu0 %431
      %435 = vset.pattern.permute.xlu0 0
      %436 = vperm.xlu0 %435, %v424
      %v437 = vpop.permute.xlu0 %436
      %440 = vset.pattern.permute.xlu0 0
      %441 = vperm.xlu0 %440, %v426
      %v442 = vpop.permute.xlu0 %441
      %445 = vset.pattern.permute.xlu0 0
      %446 = vperm.xlu0 %445, %v428
      %v447 = vpop.permute.xlu0 %446
      %v449 = vmul.f32 %v225, %v432
      %v450 = vmul.f32 %v226, %v432
      %v451 = vmul.f32 %v227, %v437
      %v452 = vmul.f32 %v228, %v437
      %v453 = vmul.f32 %v229, %v442
      %v454 = vmul.f32 %v230, %v442
      %v455 = vmul.f32 %v231, %v447
      %v456 = vmul.f32 %v232, %v447
      %457 = vst [vmem:[%s224] sm:$0xff] %v449
      %458 = vst [vmem:[%s224 + $0x8] sm:$0xff] %v450
      %459 = vst [vmem:[%s224 + $0x10] sm:$0xff] %v451
      %460 = vst [vmem:[%s224 + $0x18] sm:$0xff] %v452
      %461 = vst [vmem:[%s224 + $0x20] sm:$0xff] %v453
      %462 = vst [vmem:[%s224 + $0x28] sm:$0xff] %v454
      %463 = vst [vmem:[%s224 + $0x30] sm:$0xff] %v455
      %464 = vst [vmem:[%s224 + $0x38] sm:$0xff] %v456
      %p465 = scmp.lt.s32.totalorder %s16, 1
      %s466 = scalar_select %p465, %s16, 1
      %s467 = smul.addr %s466, 8
      %s468 = smul.addr %s467, 8
      %s469 = scalar_lea.vmem %s5, %s468
      // Predicated region
      $region41: #{channel_attention.1} parent=39 // pred_check
        %p470 = pneg %p144
      $region42: #{channel_attention.1} parent=39 // pred_check_branch
        %472 = sbr.rel (%p470) target = $region44
      $region43: #{channel_attention.1} parent=39 // pred_region
        _
      $region44: #{channel_attention.1} parent=39 // pred_fallthru
        _
    $region40: #{channel_attention.1} parent=5 // pred_fallthru
      _
    %p473 = scmp.le.s32.totalorder 2, %s11
    // Predicated region
    $region45: #{channel_attention.1} parent=5 // pred_check
      %p474 = pneg %p473
    $region46: #{channel_attention.1} parent=5 // pred_check_branch
      %476 = sbr.rel (%p474) target = $region48
    $region47: #{channel_attention.1} parent=5 // pred_region
      %s477 = ssub.s32 %s11, 2
      // Predicated region
      $region49: #{channel_attention.1} parent=47 // pred_check
        %p478 = pneg %p150
      $region50: #{channel_attention.1} parent=47 // pred_check_branch
        %480 = sbr.rel (%p478) target = $region52
      $region51: #{channel_attention.1} parent=47 // pred_region
        %p481 = scmp.lt.s32.totalorder %s17, 1
        %s482 = scalar_select %p481, %s17, 1
        %s483 = smul.addr %s482, 8
        %s484 = smul.addr %s483, 8
        %s485 = scalar_lea.vmem %s5, %s484
      $region52: #{channel_attention.1} parent=47 // pred_fallthru
        _
    $region48: #{channel_attention.1} parent=5 // pred_fallthru
      _
  $region6: #{channel_attention.1} parent=0 // loop_footer
    %s15 = sadd.s32 1, %s11
  $region7: #{channel_attention.1} parent=0 // loop_footer_branch
    %10 = sbr.rel target = $region3
  $region8: #{channel_attention.1} parent=0 // loop_exit
    _

</llo_original>
